<compile_context>
chip_gen: v5e
topology: v5e:2x2
jax: 0.10.0
libtpu: 0.0.40
codegen_flags: <defaults>
</compile_context>

<pallas_src>
import functools

import jax
import jax.numpy as jnp
from jax.experimental import pallas as pl
from jax.experimental.pallas import tpu as pltpu

_LANE = 128
_SUBLANE = 16      # row granularity safe for f32 and bf16 sublane packing
_TB_CAP = 1024     # large tiles amortize ~0.35us per-grid-step overhead


def _round_up(x, m):
    return ((x + m - 1) // m) * m


def _batch_tile(B):
    """Divisor-aware batch tile.

    * cap 1024 rows (bigger tiles -> closer to HBM roofline on v5e/v6e),
    * >=2 tiles when B > 64 so v7x's two TensorCores both get work,
    * padded tail bounded to <16 rows,
    * tiny batches use a single full-array block (block dim == array dim).
    """
    n_tiles = pl.cdiv(B, _TB_CAP)
    if B > 64:
        n_tiles = max(n_tiles, 2)
    tb = _round_up(pl.cdiv(B, n_tiles), _SUBLANE)
    if tb >= B:
        tb = B  # single block equal to the full array dim is always legal
    return tb


def _mlp_kernel(t_ref, x_ref, w1_ref, b1_ref, w2_ref, b2_ref, w3_ref, b3_ref, o_ref):
    """Fused 3-layer MLP for one batch tile.  All MXU accumulation in f32."""
    del t_ref  # the prefetched task index only drives the weight index_maps
    cdt = w1_ref.dtype                    # compute dtype follows the weights
    x = x_ref[...].astype(cdt)            # in-kernel cast: no wrapper HBM round trip
    h = jnp.dot(x, w1_ref[...], preferred_element_type=jnp.float32)
    h = jnp.maximum(h + b1_ref[...], 0.0)
    h = jnp.dot(h.astype(cdt), w2_ref[...], preferred_element_type=jnp.float32)
    h = jnp.maximum(h + b2_ref[...], 0.0)
    out = jnp.dot(h.astype(cdt), w3_ref[...], preferred_element_type=jnp.float32)
    o_ref[...] = (out + b3_ref[...]).astype(o_ref.dtype)


@functools.partial(jax.jit, static_argnames=("n_outputs",))
def mlp_forward(t, x, w1, b1, w2, b2, w3, b3, *, n_outputs):
    """Run the fused MLP Pallas kernel.

    t  : (1,) int32 task index (scalar-prefetched into SMEM).
    x  : [B, n_inputs] (any float dtype; cast to the weight dtype in-kernel).
    w_i: stacked [n_tasks, in_i, out_i] (already transposed from PyTorch (out,in)),
         hidden dims zero-padded to a 128 multiple.
    b_i: stacked [n_tasks, 1, out_i] f32.
    """
    B, n_in = x.shape
    n_tasks, _, h1p = w1.shape
    h2p = w2.shape[2]
    n_out_store = w3.shape[2]

    TB = _batch_tile(B)
    grid = (pl.cdiv(B, TB),)   # ragged last block handled by Pallas (no jnp.pad)

    def _per_task_bytes(a):
        return (a.size // n_tasks) * a.dtype.itemsize

    weight_bytes = sum(_per_task_bytes(a) for a in (w1, b1, w2, b2, w3, b3))
    bytes_accessed = (x.size * x.dtype.itemsize
                      + weight_bytes
                      + B * n_out_store * 4)
    flops = 2 * B * (n_in * h1p + h1p * h2p + h2p * n_out_store)

    # Double-buffered x/out tiles + (conservatively double-buffered) weights.
    # Explicit limit keeps larger TB / wider layers inside v7x's 64 MiB VMEM.
    vmem_need = (2 * TB * n_in * x.dtype.itemsize
                 + 2 * TB * n_out_store * 4
                 + 2 * weight_bytes)
    vmem_limit = int(min(max(vmem_need + (2 << 20), 16 << 20), 40 << 20))

    # Grid-invariant task block -> the pipeline DMAs the selected task's
    # weights exactly once.
    task_map = lambda i, t_ref: (t_ref[0], 0, 0)

    grid_spec = pltpu.PrefetchScalarGridSpec(
        num_scalar_prefetch=1,
        grid=grid,
        in_specs=[
            pl.BlockSpec((TB, n_in), lambda i, t_ref: (i, 0)),
            pl.BlockSpec((pl.Squeezed(), n_in, h1p), task_map),
            pl.BlockSpec((pl.Squeezed(), 1, h1p), task_map),
            pl.BlockSpec((pl.Squeezed(), h1p, h2p), task_map),
            pl.BlockSpec((pl.Squeezed(), 1, h2p), task_map),
            pl.BlockSpec((pl.Squeezed(), h2p, n_out_store), task_map),
            pl.BlockSpec((pl.Squeezed(), 1, n_out_store), task_map),
        ],
        out_specs=pl.BlockSpec((TB, n_out_store), lambda i, t_ref: (i, 0)),
    )

    out = pl.pallas_call(
        _mlp_kernel,
        out_shape=jax.ShapeDtypeStruct((B, n_out_store), jnp.float32),
        grid_spec=grid_spec,
        compiler_params=pltpu.CompilerParams(
            # Batch tiles are independent -> shard across v7x's 2 TensorCores.
            dimension_semantics=("parallel",),
            vmem_limit_bytes=vmem_limit),
        cost_estimate=pl.CostEstimate(
            flops=flops, transcendentals=0, bytes_accessed=bytes_accessed),
    )(t, x, w1, b1, w2, b2, w3, b3)

    return out[:, :n_outputs]


def init_mlp_params(key, sizes):
    """Deterministic init matching torch.nn.Linear (uniform +-1/sqrt(fan_in)).

    Weights are returned already transposed to (in, out); biases as (1, out).
    """
    params = []
    for i in range(len(sizes) - 1):
        fan_in, fan_out = sizes[i], sizes[i + 1]
        key, kw, kb = jax.random.split(key, 3)
        bound = 1.0 / jnp.sqrt(jnp.float32(fan_in))
        w = jax.random.uniform(kw, (fan_in, fan_out), jnp.float32, -bound, bound)
        b = jax.random.uniform(kb, (1, fan_out), jnp.float32, -bound, bound)
        params.append((w, b))
    return params


class NetPallas:
    """Mirror of the PyTorch Net (default MLP branch) built on one fused Pallas kernel.

    All tasks' parameters are stacked; the task index is passed as a prefetched
    scalar, so one compiled kernel serves every task.
    """

    def __init__(self, n_inputs, n_outputs, n_tasks, n_layers, n_hiddens, key,
                 param_dtype=jnp.float32):
        assert n_layers == 2, "fused kernel is written for n_layers == 2 (3 Linear layers)"
        self.n_outputs = n_outputs
        self.n_tasks = n_tasks
        self.hidden = int(n_hiddens / n_tasks)
        sizes = [n_inputs] + [self.hidden] * n_layers + [n_outputs]

        # Zero-pad the narrow hidden dims to the 128-lane width: exact through
        # ReLU, costs no extra MXU passes, and keeps intermediates lane-dense.
        h_pad = _round_up(self.hidden, _LANE)
        # Only lane-pad the output when the waste is bounded (<=2x); otherwise
        # keep it unpadded so the output HBM stream stays small.
        n_out_full = _round_up(n_outputs, _LANE)
        n_out_store = n_out_full if n_out_full <= 2 * n_outputs else n_outputs
        self.n_out_store = n_out_store

        dh = h_pad - self.hidden
        do = n_out_store - n_outputs

        w1s, b1s, w2s, b2s, w3s, b3s = [], [], [], [], [], []
        for _ in range(n_tasks):
            key, sub = jax.random.split(key)
            (w1, b1), (w2, b2), (w3, b3) = init_mlp_params(sub, sizes)
            w1 = jnp.pad(w1, ((0, 0), (0, dh)))
            b1 = jnp.pad(b1, ((0, 0), (0, dh)))
            w2 = jnp.pad(w2, ((0, dh), (0, dh)))
            b2 = jnp.pad(b2, ((0, 0), (0, dh)))
            w3 = jnp.pad(w3, ((0, dh), (0, do)))
            b3 = jnp.pad(b3, ((0, 0), (0, do)))
            w1s.append(w1); b1s.append(b1)
            w2s.append(w2); b2s.append(b2)
            w3s.append(w3); b3s.append(b3)

        # Stacked [n_tasks, ...]; weights optionally bf16 (f32 accumulation in
        # the kernel), biases kept f32.
        self.w1 = jnp.stack(w1s).astype(param_dtype)
        self.w2 = jnp.stack(w2s).astype(param_dtype)
        self.w3 = jnp.stack(w3s).astype(param_dtype)
        self.b1 = jnp.stack(b1s)
        self.b2 = jnp.stack(b2s)
        self.b3 = jnp.stack(b3s)

    def forward(self, x, t):
        t_arr = jnp.asarray([t], dtype=jnp.int32)
        return mlp_forward(t_arr, x, self.w1, self.b1, self.w2, self.b2,
                           self.w3, self.b3, n_outputs=self.n_outputs)


if __name__ == "__main__":
    # Small shapes consistent with the module: n_layers=2, n_hiddens=64, n_tasks=2
    # -> per-task hidden = 32; n_inputs=64, n_outputs=10, batch=2.
    B, n_inputs, n_outputs = 2, 64, 10
    n_tasks, n_layers, n_hiddens = 2, 2, 64

    key = jax.random.PRNGKey(0)
    key, kx, knet = jax.random.split(key, 3)
    x = jax.random.normal(kx, (B, n_inputs), jnp.float32)

    # f32 parameters: bit-faithful to the PyTorch f32 reference.
    net = NetPallas(n_inputs, n_outputs, n_tasks, n_layers, n_hiddens, knet,
                    param_dtype=jnp.float32)
    H = net.hidden

    def jax_ref(net_obj, xx, t):
        w1 = net_obj.w1[t, :, :H].astype(jnp.float32); b1 = net_obj.b1[t, :, :H]
        w2 = net_obj.w2[t, :H, :H].astype(jnp.float32); b2 = net_obj.b2[t, :, :H]
        w3 = net_obj.w3[t, :H, :n_outputs].astype(jnp.float32)
        b3 = net_obj.b3[t, :, :n_outputs]
        h = jnp.maximum(xx @ w1 + b1, 0.0)
        h = jnp.maximum(h @ w2 + b2, 0.0)
        return h @ w3 + b3

    out_t0 = None
    # One compiled kernel serves every task (task index is a prefetched scalar).
    for t in range(n_tasks):
        out = jax.block_until_ready(net.forward(x, t))
        assert out.shape == (B, n_outputs), out.shape
        if t == 0:
            out_t0 = out
        ref = jax_ref(net, x, t)
        assert jnp.allclose(out, ref, atol=1e-5, rtol=1e-5), float(
            jnp.max(jnp.abs(out - ref)))

    # bf16 weights/activations with f32 MXU accumulation (full MXU rate, half
    # the weight/activation HBM traffic on v5e/v6e/v7x).
    net_bf16 = NetPallas(n_inputs, n_outputs, n_tasks, n_layers, n_hiddens, knet,
                         param_dtype=jnp.bfloat16)
    out_bf16 = jax.block_until_ready(net_bf16.forward(x, 0))
    assert out_bf16.shape == (B, n_outputs)
    assert jnp.allclose(out_bf16, out_t0, atol=1e-1, rtol=1e-1)

    # Larger, ragged batch: exercises the no-pad cdiv grid (>=2 tiles, partial
    # last block) without any wrapper-side jnp.pad of x.
    B2 = 100
    x2 = jax.random.normal(kx, (B2, n_inputs), jnp.float32)
    out2 = jax.block_until_ready(net.forward(x2, 1))
    assert out2.shape == (B2, n_outputs)
    ref2 = jax_ref(net, x2, 1)
    assert jnp.allclose(out2, ref2, atol=1e-5, rtol=1e-5), float(
        jnp.max(jnp.abs(out2 - ref2)))

    print("KERNEL_OK")
</pallas_src>

<mosaic_0001>
module attributes {stable_mosaic.version = 11 : i64} {
  func.func @_mlp_kernel(%arg0: i32, %arg1: memref<1xi32, #tpu.memory_space<smem>>, %arg2: memref<2x64xf32, #tpu.memory_space<vmem>>, %arg3: memref<1x64x128xf32, #tpu.memory_space<vmem>>, %arg4: memref<1x1x128xf32, #tpu.memory_space<vmem>>, %arg5: memref<1x128x128xf32, #tpu.memory_space<vmem>>, %arg6: memref<1x1x128xf32, #tpu.memory_space<vmem>>, %arg7: memref<1x128x10xf32, #tpu.memory_space<vmem>>, %arg8: memref<1x1x10xf32, #tpu.memory_space<vmem>>, %arg9: memref<2x10xf32, #tpu.memory_space<vmem>>) attributes {dimension_semantics = [#tpu.dimension_semantics<parallel>], iteration_bounds = array<i64: 1>, scalar_prefetch = 1 : i64, scratch_operands = 0 : i64, tpu.core_type = #tpu.core_type<tc>, window_params = [{transform_indices = @transform_0, window_bounds = array<i64: 2, 64>}, {transform_indices = @transform_1, window_bounds = array<i64: 1, 64, 128>}, {transform_indices = @transform_2, window_bounds = array<i64: 1, 1, 128>}, {transform_indices = @transform_3, window_bounds = array<i64: 1, 128, 128>}, {transform_indices = @transform_4, window_bounds = array<i64: 1, 1, 128>}, {transform_indices = @transform_5, window_bounds = array<i64: 1, 128, 10>}, {transform_indices = @transform_6, window_bounds = array<i64: 1, 1, 10>}, {transform_indices = @transform_7, window_bounds = array<i64: 2, 10>}]} {
    %c0 = arith.constant 0 : index
    %c0_0 = arith.constant 0 : index
    %0 = vector.load %arg2[%c0, %c0_0] : memref<2x64xf32, #tpu.memory_space<vmem>>, vector<2x64xf32>
    %c0_1 = arith.constant 0 : index
    %c0_2 = arith.constant 0 : index
    %c0_3 = arith.constant 0 : index
    %1 = vector.load %arg3[%c0_1, %c0_2, %c0_3] : memref<1x64x128xf32, #tpu.memory_space<vmem>>, vector<1x64x128xf32>
    %2 = vector.shape_cast %1 : vector<1x64x128xf32> to vector<64x128xf32>
    %cst = arith.constant dense<0.000000e+00> : vector<2x128xf32>
    %3 = tpu.matmul %0, %2, %cst {dimension_numbers = #tpu.dot_dimension_numbers<[1], [0], [0], [1], [0, 0, 1, 1], [], []>} : vector<2x64xf32>, vector<64x128xf32>, vector<2x128xf32> -> vector<2x128xf32>
    %c0_4 = arith.constant 0 : index
    %c0_5 = arith.constant 0 : index
    %c0_6 = arith.constant 0 : index
    %4 = vector.load %arg4[%c0_4, %c0_5, %c0_6] : memref<1x1x128xf32, #tpu.memory_space<vmem>>, vector<1x1x128xf32>
    %5 = vector.shape_cast %4 : vector<1x1x128xf32> to vector<1x128xf32>
    %6 = vector.broadcast %5 : vector<1x128xf32> to vector<2x128xf32>
    %7 = arith.addf %3, %6 : vector<2x128xf32>
    %cst_7 = arith.constant 0.000000e+00 : f32
    %8 = vector.broadcast %cst_7 : f32 to vector<2x128xf32>
    %9 = arith.maximumf %7, %8 : vector<2x128xf32>
    %c0_8 = arith.constant 0 : index
    %c0_9 = arith.constant 0 : index
    %c0_10 = arith.constant 0 : index
    %10 = vector.load %arg5[%c0_8, %c0_9, %c0_10] : memref<1x128x128xf32, #tpu.memory_space<vmem>>, vector<1x128x128xf32>
    %11 = vector.shape_cast %10 : vector<1x128x128xf32> to vector<128x128xf32>
    %cst_11 = arith.constant dense<0.000000e+00> : vector<2x128xf32>
    %12 = tpu.matmul %9, %11, %cst_11 {dimension_numbers = #tpu.dot_dimension_numbers<[1], [0], [0], [1], [0, 0, 1, 1], [], []>} : vector<2x128xf32>, vector<128x128xf32>, vector<2x128xf32> -> vector<2x128xf32>
    %c0_12 = arith.constant 0 : index
    %c0_13 = arith.constant 0 : index
    %c0_14 = arith.constant 0 : index
    %13 = vector.load %arg6[%c0_12, %c0_13, %c0_14] : memref<1x1x128xf32, #tpu.memory_space<vmem>>, vector<1x1x128xf32>
    %14 = vector.shape_cast %13 : vector<1x1x128xf32> to vector<1x128xf32>
    %15 = vector.broadcast %14 : vector<1x128xf32> to vector<2x128xf32>
    %16 = arith.addf %12, %15 : vector<2x128xf32>
    %cst_15 = arith.constant 0.000000e+00 : f32
    %17 = vector.broadcast %cst_15 : f32 to vector<2x128xf32>
    %18 = arith.maximumf %16, %17 : vector<2x128xf32>
    %c0_16 = arith.constant 0 : index
    %c0_17 = arith.constant 0 : index
    %c0_18 = arith.constant 0 : index
    %19 = vector.load %arg7[%c0_16, %c0_17, %c0_18] : memref<1x128x10xf32, #tpu.memory_space<vmem>>, vector<1x128x10xf32>
    %20 = vector.shape_cast %19 : vector<1x128x10xf32> to vector<128x10xf32>
    %cst_19 = arith.constant dense<0.000000e+00> : vector<2x10xf32>
    %21 = tpu.matmul %18, %20, %cst_19 {dimension_numbers = #tpu.dot_dimension_numbers<[1], [0], [0], [1], [0, 0, 1, 1], [], []>} : vector<2x128xf32>, vector<128x10xf32>, vector<2x10xf32> -> vector<2x10xf32>
    %c0_20 = arith.constant 0 : index
    %c0_21 = arith.constant 0 : index
    %c0_22 = arith.constant 0 : index
    %22 = vector.load %arg8[%c0_20, %c0_21, %c0_22] : memref<1x1x10xf32, #tpu.memory_space<vmem>>, vector<1x1x10xf32>
    %23 = vector.shape_cast %22 : vector<1x1x10xf32> to vector<1x10xf32>
    %24 = vector.broadcast %23 : vector<1x10xf32> to vector<2x10xf32>
    %25 = arith.addf %21, %24 : vector<2x10xf32>
    %c0_23 = arith.constant 0 : index
    %c0_24 = arith.constant 0 : index
    %26 = vector.load %arg9[%c0_23, %c0_24] : memref<2x10xf32, #tpu.memory_space<vmem>>, vector<2x10xf32>
    tpu.vector_store %arg9[%c0_23, %c0_24], %25 {strides = array<i32>} : memref<2x10xf32, #tpu.memory_space<vmem>>, vector<2x10xf32>,
    return
  }
  func.func @transform_0(%arg0: i32, %arg1: memref<1xi32, #tpu.memory_space<smem>>) -> (i32, i32) {
    %c0_i32 = arith.constant 0 : i32
    %c0_i32_0 = arith.constant 0 : i32
    return %arg0, %c0_i32 : i32, i32
  }
  func.func @transform_1(%arg0: i32, %arg1: memref<1xi32, #tpu.memory_space<smem>>) -> (i32, i32, i32) {
    %c0 = arith.constant 0 : index
    %0 = memref.load %arg1[%c0] : memref<1xi32, #tpu.memory_space<smem>>
    %c0_i32 = arith.constant 0 : i32
    %c0_i32_0 = arith.constant 0 : i32
    %c0_i32_1 = arith.constant 0 : i32
    return %0, %c0_i32, %c0_i32_0 : i32, i32, i32
  }
  func.func @transform_2(%arg0: i32, %arg1: memref<1xi32, #tpu.memory_space<smem>>) -> (i32, i32, i32) {
    %c0 = arith.constant 0 : index
    %0 = memref.load %arg1[%c0] : memref<1xi32, #tpu.memory_space<smem>>
    %c0_i32 = arith.constant 0 : i32
    %c0_i32_0 = arith.constant 0 : i32
    %c0_i32_1 = arith.constant 0 : i32
    return %0, %c0_i32, %c0_i32_0 : i32, i32, i32
  }
  func.func @transform_3(%arg0: i32, %arg1: memref<1xi32, #tpu.memory_space<smem>>) -> (i32, i32, i32) {
    %c0 = arith.constant 0 : index
    %0 = memref.load %arg1[%c0] : memref<1xi32, #tpu.memory_space<smem>>
    %c0_i32 = arith.constant 0 : i32
    %c0_i32_0 = arith.constant 0 : i32
    %c0_i32_1 = arith.constant 0 : i32
    return %0, %c0_i32, %c0_i32_0 : i32, i32, i32
  }
  func.func @transform_4(%arg0: i32, %arg1: memref<1xi32, #tpu.memory_space<smem>>) -> (i32, i32, i32) {
    %c0 = arith.constant 0 : index
    %0 = memref.load %arg1[%c0] : memref<1xi32, #tpu.memory_space<smem>>
    %c0_i32 = arith.constant 0 : i32
    %c0_i32_0 = arith.constant 0 : i32
    %c0_i32_1 = arith.constant 0 : i32
    return %0, %c0_i32, %c0_i32_0 : i32, i32, i32
  }
  func.func @transform_5(%arg0: i32, %arg1: memref<1xi32, #tpu.memory_space<smem>>) -> (i32, i32, i32) {
    %c0 = arith.constant 0 : index
    %0 = memref.load %arg1[%c0] : memref<1xi32, #tpu.memory_space<smem>>
    %c0_i32 = arith.constant 0 : i32
    %c0_i32_0 = arith.constant 0 : i32
    %c0_i32_1 = arith.constant 0 : i32
    return %0, %c0_i32, %c0_i32_0 : i32, i32, i32
  }
  func.func @transform_6(%arg0: i32, %arg1: memref<1xi32, #tpu.memory_space<smem>>) -> (i32, i32, i32) {
    %c0 = arith.constant 0 : index
    %0 = memref.load %arg1[%c0] : memref<1xi32, #tpu.memory_space<smem>>
    %c0_i32 = arith.constant 0 : i32
    %c0_i32_0 = arith.constant 0 : i32
    %c0_i32_1 = arith.constant 0 : i32
    return %0, %c0_i32, %c0_i32_0 : i32, i32, i32
  }
  func.func @transform_7(%arg0: i32, %arg1: memref<1xi32, #tpu.memory_space<smem>>) -> (i32, i32) {
    %c0_i32 = arith.constant 0 : i32
    %c0_i32_0 = arith.constant 0 : i32
    return %arg0, %c0_i32 : i32, i32
  }
}

</mosaic_0001>

<llo_original>
// kernel: mlp_forward.1
$region0: #{mlp_forward.1}
  #allocation0 [shape = 'u32[]', space=smem, size = 0x4, offset = 0x4, fixed_abs, tag = 'smem constant byte address 0x4 - core index']
  #allocation1 [shape = 'u32[72,128]{1,0:T(1,128)}', space=vmem, size = 0x9000, scoped, tag = 'internal scratch']
  #allocation2 [shape = 's32[1]{0}', space=sflag, size = 0x4, scoped, tag = 'scoped memory for mlp_forward.1']
  #allocation3 [shape = 's32[1]{0:T(128)S(6)}', space=smem, size = 0x200, scoped, tag = 'prefetched SMEM operand 0']
  %s0 = inlined_call_operand.<no memory space> [shape: s32[1], index: 0, kind: input, shape index: {}]
  %s1 = inlined_call_operand.vmem [shape: f32[2,64], index: 1, kind: input, shape index: {}]
  %s2 = inlined_call_operand.hbm [shape: f32[2,64,128], index: 2, kind: input, shape index: {}]
  %s3 = inlined_call_operand.vmem [shape: f32[2,1,128], index: 3, kind: input, shape index: {}]
  %s4 = inlined_call_operand.vmem [shape: f32[2,128,128], index: 4, kind: input, shape index: {}]
  %s5 = inlined_call_operand.vmem [shape: f32[2,1,128], index: 5, kind: input, shape index: {}]
  %s6 = inlined_call_operand.vmem [shape: f32[2,128,10], index: 6, kind: input, shape index: {}]
  %s7 = inlined_call_operand.vmem [shape: f32[2,1,10], index: 7, kind: input, shape index: {}]
  %s8 = inlined_call_operand.hbm [shape: f32[2,10], index: 8, kind: output, shape index: {}]
  %s9 = sld [smem:[#allocation0]]
  $region42: #{mlp_forward.1} parent=0
    _
  %s11 = ssub.s32 1, %s9
  %s12 = scalar_select 0, %s11, %s9
  %13 = sst [smem:[#allocation3]] %s0
  $region1: #{mlp_forward.1} parent=0
    #allocation4 [shape = 'u8[32768]{0}', space=vmem, size = 0x8000, scoped, tag = 'input window, operand 2, single buffered']
    #allocation5 [shape = 's32[1]{0}', space=sflag, size = 0x4, scoped, tag = 'scoped memory for mlp_forward.1']
    #allocation6 [shape = 's32[1]{0}', space=sflag, size = 0x4, scoped, tag = 'scoped memory for mlp_forward.1']
    #allocation7 [shape = 'u8[1024]{0}', space=vmem, size = 0x400, scoped, tag = 'output window, operand 0, single buffered']
    %14 = vsyncpa [#allocation5], 0
    %15 = vsyncpa [#allocation6], 0
    // Predicated region
    $region2: #{mlp_forward.1} parent=1 // pred_check
      _
    $region3: #{mlp_forward.1} parent=1 // pred_check_branch
      %17 = sbr.rel (0) target = $region5
    $region4: #{mlp_forward.1} parent=1 // pred_region
      _
    $region5: #{mlp_forward.1} parent=1 // pred_fallthru
      _
    // Predicated region
    $region6: #{mlp_forward.1} parent=1 // pred_check
      _
    $region7: #{mlp_forward.1} parent=1 // pred_check_branch
      %19 = sbr.rel (0) target = $region9
    $region8: #{mlp_forward.1} parent=1 // pred_region
      %s20 = sld [smem:[#allocation3]]
      %22 = vsyncadd [#allocation5], 0
      %s23 = smul.addr %s20, 8
      %s24 = smul.addr %s23, 8
      %s25 = scalar_lea.hbm %s2, %s24
      %s26 = sshll.u32 %s25, 4
      %s27 = int_to_ptr.hbm [resolvable:$true] %s26
      %s28 = sshll.u32 [#allocation4], 4
      %s29 = int_to_ptr.vmem [resolvable:$true] %s28
      %34 = dma.hbm_to_vmem [thread:$0]  %s27, 1024, %s29, [#allocation5], 128, 128, 8
    $region9: #{mlp_forward.1} parent=1 // pred_fallthru
      _
    // Predicated region
    $region10: #{mlp_forward.1} parent=1 // pred_check
      _
    $region11: #{mlp_forward.1} parent=1 // pred_check_branch
      %36 = sbr.rel (0) target = $region13
    $region12: #{mlp_forward.1} parent=1 // pred_region
      %s37 = sld [smem:[#allocation3]]
      %p38 = scmp.lt.s32.totalorder %s37, 1
      %s39 = scalar_select %p38, %s37, 1
      %s40 = scalar_lea.vmem %s3, %s39
      %s41 = sld [smem:[#allocation3]]
    $region13: #{mlp_forward.1} parent=1 // pred_fallthru
      _
    // Predicated region
    $region14: #{mlp_forward.1} parent=1 // pred_check
      _
    $region15: #{mlp_forward.1} parent=1 // pred_check_branch
      %43 = sbr.rel (0) target = $region17
    $region16: #{mlp_forward.1} parent=1 // pred_region
      %s44 = sld [smem:[#allocation3]]
      %p45 = scmp.lt.s32.totalorder %s44, 1
      %s46 = scalar_select %p45, %s44, 1
      %s47 = smul.addr %s46, 16
      %s48 = smul.addr %s47, 8
      %s49 = scalar_lea.vmem %s4, %s48
      %s50 = sld [smem:[#allocation3]]
    $region17: #{mlp_forward.1} parent=1 // pred_fallthru
      _
    // Predicated region
    $region18: #{mlp_forward.1} parent=1 // pred_check
      _
    $region19: #{mlp_forward.1} parent=1 // pred_check_branch
      %52 = sbr.rel (0) target = $region21
    $region20: #{mlp_forward.1} parent=1 // pred_region
      %s53 = sld [smem:[#allocation3]]
      %p54 = scmp.lt.s32.totalorder %s53, 1
      %s55 = scalar_select %p54, %s53, 1
      %s56 = scalar_lea.vmem %s5, %s55
      %s57 = sld [smem:[#allocation3]]
    $region21: #{mlp_forward.1} parent=1 // pred_fallthru
      _
    // Predicated region
    $region22: #{mlp_forward.1} parent=1 // pred_check
      _
    $region23: #{mlp_forward.1} parent=1 // pred_check_branch
      %59 = sbr.rel (0) target = $region25
    $region24: #{mlp_forward.1} parent=1 // pred_region
      %s60 = sld [smem:[#allocation3]]
      %p61 = scmp.lt.s32.totalorder %s60, 1
      %s62 = scalar_select %p61, %s60, 1
      %s63 = smul.addr %s62, 16
      %s64 = smul.addr %s63, 8
      %s65 = scalar_lea.vmem %s6, %s64
      %s66 = sld [smem:[#allocation3]]
    $region25: #{mlp_forward.1} parent=1 // pred_fallthru
      _
    // Predicated region
    $region26: #{mlp_forward.1} parent=1 // pred_check
      _
    $region27: #{mlp_forward.1} parent=1 // pred_check_branch
      %68 = sbr.rel (0) target = $region29
    $region28: #{mlp_forward.1} parent=1 // pred_region
      %s69 = sld [smem:[#allocation3]]
      %p70 = scmp.lt.s32.totalorder %s69, 1
      %s71 = scalar_select %p70, %s69, 1
      %s72 = scalar_lea.vmem %s7, %s71
      %s73 = sld [smem:[#allocation3]]
    $region29: #{mlp_forward.1} parent=1 // pred_fallthru
      _
    // Predicated region
    $region30: #{mlp_forward.1} parent=1 // pred_check
      _
    $region31: #{mlp_forward.1} parent=1 // pred_check_branch
      %75 = sbr.rel (0) target = $region33
    $region32: #{mlp_forward.1} parent=1 // pred_region
      %77 = dma.done [#allocation5], 1024
    $region33: #{mlp_forward.1} parent=1 // pred_fallthru
      _
    %s78 = sld [smem:[#allocation3]]
    %p79 = scmp.lt.s32.totalorder %s78, 1
    %s80 = scalar_select %p79, %s78, 1
    %s81 = scalar_lea.vmem %s3, %s80
    %s82 = sld [smem:[#allocation3]]
    %p83 = scmp.lt.s32.totalorder %s82, 1
    %s84 = scalar_select %p83, %s82, 1
    %s85 = smul.addr %s84, 16
    %s86 = smul.addr %s85, 8
    %s87 = scalar_lea.vmem %s4, %s86
    %s88 = sld [smem:[#allocation3]]
    %p89 = scmp.lt.s32.totalorder %s88, 1
    %s90 = scalar_select %p89, %s88, 1
    %s91 = scalar_lea.vmem %s5, %s90
    %s92 = sld [smem:[#allocation3]]
    %p93 = scmp.lt.s32.totalorder %s92, 1
    %s94 = scalar_select %p93, %s92, 1
    %s95 = smul.addr %s94, 16
    %s96 = smul.addr %s95, 8
    %s97 = scalar_lea.vmem %s6, %s96
    %s98 = sld [smem:[#allocation3]]
    %p99 = scmp.lt.s32.totalorder %s98, 1
    %s100 = scalar_select %p99, %s98, 1
    %s101 = scalar_lea.vmem %s7, %s100
    %s102 = sld [smem:[#allocation3]]
    %s103 = sld [smem:[#allocation3]]
    %p104 = scmp.lt.s32.totalorder %s103, 1
    %s105 = scalar_select %p104, %s103, 1
    %s106 = scalar_lea.vmem %s3, %s105
    %s107 = sld [smem:[#allocation3]]
    %s108 = sld [smem:[#allocation3]]
    %p109 = scmp.lt.s32.totalorder %s108, 1
    %s110 = scalar_select %p109, %s108, 1
    %s111 = smul.addr %s110, 16
    %s112 = smul.addr %s111, 8
    %s113 = scalar_lea.vmem %s4, %s112
    %s114 = sld [smem:[#allocation3]]
    %s115 = sld [smem:[#allocation3]]
    %p116 = scmp.lt.s32.totalorder %s115, 1
    %s117 = scalar_select %p116, %s115, 1
    %s118 = scalar_lea.vmem %s5, %s117
    %s119 = sld [smem:[#allocation3]]
    %s120 = sld [smem:[#allocation3]]
    %p121 = scmp.lt.s32.totalorder %s120, 1
    %s122 = scalar_select %p121, %s120, 1
    %s123 = smul.addr %s122, 16
    %s124 = smul.addr %s123, 8
    %s125 = scalar_lea.vmem %s6, %s124
    %s126 = sld [smem:[#allocation3]]
    %s127 = sld [smem:[#allocation3]]
    %p128 = scmp.lt.s32.totalorder %s127, 1
    %s129 = scalar_select %p128, %s127, 1
    %s130 = scalar_lea.vmem %s7, %s129
    %s131 = sld [smem:[#allocation3]]
    %v132 = vld [vmem:[%s1] sm:$0x3]
    %v133 = vld [vmem:[#allocation4] sm:$0xff]
    %v134 = vld [vmem:[#allocation4 + $0x8] sm:$0xff]
    %v135 = vld [vmem:[#allocation4 + $0x10] sm:$0xff]
    %v136 = vld [vmem:[#allocation4 + $0x18] sm:$0xff]
    %v137 = vld [vmem:[#allocation4 + $0x20] sm:$0xff]
    %v138 = vld [vmem:[#allocation4 + $0x28] sm:$0xff]
    %v139 = vld [vmem:[#allocation4 + $0x30] sm:$0xff]
    %v140 = vld [vmem:[#allocation4 + $0x38] sm:$0xff]
    %v141 = vld [vmem:[%s106] sm:$0x1]
    %v143 = vperm.slane %v141, 0
    %vm145 = vcmask 523264
    %v147 = vsel %vm145, %v132, 0
    %149 = vmatpush.msra.mxu0 0.0
    %150 = vmatpush.msra.mxu0 0.0
    %151 = vmatpush.msra.mxu0 0.0
    %152 = vmatpush.msra.mxu0 0.0
    %153 = vmatpush.msra.mxu0 0.0
    %154 = vmatpush.msra.mxu0 0.0
    %155 = vmatpush.msra.mxu0 0.0
    %156 = vmatpush.msra.mxu0 0.0
    %157 = vmatpush.msra.mxu0 %v140
    %158 = vmatpush.msra.mxu0 %v139
    %159 = vmatpush.msra.mxu0 %v138
    %160 = vmatpush.msra.mxu0 %v137
    %161 = vmatpush.msra.mxu0 %v136
    %162 = vmatpush.msra.mxu0 %v135
    %163 = vmatpush.msra.mxu0 %v134
    %164 = vmatpush.msra.mxu0 %v133
    %165 = vmatmul.f32.gmra.mxu0 %v147
    %v166 = vpop.f32.mrf.mxu0
    %v167 = vadd.f32 %v143, %v166
    %168 = vdwg.mxu0
    %v169 = vmax.f32 %v167, 0.0
    %v170 = vld [vmem:[%s113] sm:$0xff]
    %v171 = vld [vmem:[%s113 + $0x8] sm:$0xff]
    %v172 = vld [vmem:[%s113 + $0x10] sm:$0xff]
    %v173 = vld [vmem:[%s113 + $0x18] sm:$0xff]
    %v174 = vld [vmem:[%s113 + $0x20] sm:$0xff]
    %v175 = vld [vmem:[%s113 + $0x28] sm:$0xff]
    %v176 = vld [vmem:[%s113 + $0x30] sm:$0xff]
    %v177 = vld [vmem:[%s113 + $0x38] sm:$0xff]
    %v178 = vld [vmem:[%s113 + $0x40] sm:$0xff]
    %v179 = vld [vmem:[%s113 + $0x48] sm:$0xff]
    %v180 = vld [vmem:[%s113 + $0x50] sm:$0xff]
    %v181 = vld [vmem:[%s113 + $0x58] sm:$0xff]
    %v182 = vld [vmem:[%s113 + $0x60] sm:$0xff]
    %v183 = vld [vmem:[%s113 + $0x68] sm:$0xff]
    %v184 = vld [vmem:[%s113 + $0x70] sm:$0xff]
    %v185 = vld [vmem:[%s113 + $0x78] sm:$0xff]
    %v186 = vld [vmem:[%s118] sm:$0x1]
    %v188 = vperm.slane %v186, 0
    %190 = vmatpush.msra.mxu0 %v185
    %191 = vmatpush.msra.mxu0 %v184
    %192 = vmatpush.msra.mxu0 %v183
    %193 = vmatpush.msra.mxu0 %v182
    %194 = vmatpush.msra.mxu0 %v181
    %195 = vmatpush.msra.mxu0 %v180
    %196 = vmatpush.msra.mxu0 %v179
    %197 = vmatpush.msra.mxu0 %v178
    %198 = vmatpush.msra.mxu0 %v177
    %199 = vmatpush.msra.mxu0 %v176
    %200 = vmatpush.msra.mxu0 %v175
    %201 = vmatpush.msra.mxu0 %v174
    %202 = vmatpush.msra.mxu0 %v173
    %203 = vmatpush.msra.mxu0 %v172
    %204 = vmatpush.msra.mxu0 %v171
    %205 = vmatpush.msra.mxu0 %v170
    %206 = vmatmul.f32.gmra.mxu0 %v169
    %v207 = vpop.f32.mrf.mxu0
    %v208 = vadd.f32 %v188, %v207
    %209 = vdwg.mxu0
    %v210 = vmax.f32 %v208, 0.0
    %v211 = vld [vmem:[%s125] sm:$0xff]
    %v212 = vld [vmem:[%s125 + $0x8] sm:$0xff]
    %v213 = vld [vmem:[%s125 + $0x10] sm:$0xff]
    %v214 = vld [vmem:[%s125 + $0x18] sm:$0xff]
    %v215 = vld [vmem:[%s125 + $0x20] sm:$0xff]
    %v216 = vld [vmem:[%s125 + $0x28] sm:$0xff]
    %v217 = vld [vmem:[%s125 + $0x30] sm:$0xff]
    %v218 = vld [vmem:[%s125 + $0x38] sm:$0xff]
    %v219 = vld [vmem:[%s125 + $0x40] sm:$0xff]
    %v220 = vld [vmem:[%s125 + $0x48] sm:$0xff]
    %v221 = vld [vmem:[%s125 + $0x50] sm:$0xff]
    %v222 = vld [vmem:[%s125 + $0x58] sm:$0xff]
    %v223 = vld [vmem:[%s125 + $0x60] sm:$0xff]
    %v224 = vld [vmem:[%s125 + $0x68] sm:$0xff]
    %v225 = vld [vmem:[%s125 + $0x70] sm:$0xff]
    %v226 = vld [vmem:[%s125 + $0x78] sm:$0xff]
    %v227 = vld [vmem:[%s130] sm:$0x1]
    %v229 = vperm.slane %v227, 0
    %231 = vmatpush.msra.mxu0 %v226
    %232 = vmatpush.msra.mxu0 %v225
    %233 = vmatpush.msra.mxu0 %v224
    %234 = vmatpush.msra.mxu0 %v223
    %235 = vmatpush.msra.mxu0 %v222
    %236 = vmatpush.msra.mxu0 %v221
    %237 = vmatpush.msra.mxu0 %v220
    %238 = vmatpush.msra.mxu0 %v219
    %239 = vmatpush.msra.mxu0 %v218
    %240 = vmatpush.msra.mxu0 %v217
    %241 = vmatpush.msra.mxu0 %v216
    %242 = vmatpush.msra.mxu0 %v215
    %243 = vmatpush.msra.mxu0 %v214
    %244 = vmatpush.msra.mxu0 %v213
    %245 = vmatpush.msra.mxu0 %v212
    %246 = vmatpush.msra.mxu0 %v211
    %247 = vmatmul.f32.gmra.mxu0 %v210
    %v248 = vpop.f32.mrf.mxu0
    %v249 = vadd.f32 %v229, %v248
    %250 = vdwg.mxu0
    %vm251 = vcmask 74752
    %252 = vst.msk [vmem:[#allocation7] sm:$0x3] %vm251, %v249
    // Predicated region
    $region34: #{mlp_forward.1} parent=1 // pred_check
      _
    $region35: #{mlp_forward.1} parent=1 // pred_check_branch
      %254 = sbr.rel (0) target = $region37
    $region36: #{mlp_forward.1} parent=1 // pred_region
      %256 = vsyncadd [#allocation6], 0
      %s258 = sshll.u32 [#allocation7], 4
      %s259 = int_to_ptr.vmem [resolvable:$true] %s258
      %s260 = sshll.u32 %s8, 4
      %s261 = int_to_ptr.hbm [resolvable:$true] %s260
      %263 = dma.vmem_to_hbm [thread:$0]  %s259, 32, %s261, [#allocation6]
    $region37: #{mlp_forward.1} parent=1 // pred_fallthru
      _
    // Predicated region
    $region38: #{mlp_forward.1} parent=1 // pred_check
      _
    $region39: #{mlp_forward.1} parent=1 // pred_check_branch
      %265 = sbr.rel (0) target = $region41
    $region40: #{mlp_forward.1} parent=1 // pred_region
      %267 = dma.done [#allocation6], 32
    $region41: #{mlp_forward.1} parent=1 // pred_fallthru
      _
    %268 = vsyncpa [#allocation5], 1
    %269 = vsyncpa [#allocation6], 1

</llo_original>
